<compile_context>
chip_gen: v5e
topology: v5e:2x2
jax: 0.10.0
libtpu: 0.0.40
codegen_flags: <defaults>
</compile_context>

<pallas_src>
import math

import jax
import jax.numpy as jnp
from jax.experimental import pallas as pl
from jax.experimental.pallas import tpu as pltpu

NUM_BITS = 8
EMA_DECAY = 0.999

LANES = 128
REDUCE_BLOCK_BYTES = 4 * 1024 * 1024   # kernel A block (only the input is double-buffered)
QUANT_BLOCK_BYTES = 2 * 1024 * 1024    # kernel B block (input + output double-buffered)
FUSE_MAX_F32_BYTES = 4 * 1024 * 1024   # single-pass fused path threshold (conservative)
VMEM_LIMIT = 32 * 1024 * 1024          # explicit scoped-VMEM limit, safe on v5e/v6e/v7x


def init_fake_quant_state():
    """Buffers of FakeLinearQuantization.__init__, stored as (1, 1) float32 arrays."""
    z = jnp.zeros((1, 1), jnp.float32)
    return {
        "iter_count": z,
        "tracked_min_biased": z,
        "tracked_min": z,
        "tracked_max_biased": z,
        "tracked_max": z,
        "scale": jnp.ones((1, 1), jnp.float32),
        "zero_point": z,
    }


def _block_rows_for(rows, target_block_bytes):
    """Pick a row-block size (multiple of 8, or the full extent) and a cdiv grid size."""
    target = max(8, target_block_bytes // (LANES * 4))
    if rows <= target:
        return rows, 1
    block_rows = (target // 8) * 8
    n_blocks = -(-rows // block_rows)
    return block_rows, n_blocks


def _tile_min(y):
    return jnp.min(jnp.min(y, axis=1, keepdims=True), axis=0, keepdims=True)


def _tile_max(y):
    return jnp.max(jnp.max(y, axis=1, keepdims=True), axis=0, keepdims=True)


def _masked_tile_minmax(y, start_elem, total, shape):
    """min/max over the valid (linear index < total) part of a block; pad/OOB is neutral."""
    rows, cols = shape
    r = jax.lax.broadcasted_iota(jnp.int32, shape, 0)
    c = jax.lax.broadcasted_iota(jnp.int32, shape, 1)
    lin = start_elem + r * cols + c          # assumes total < 2**31 elements
    valid = lin < total
    return (_tile_min(jnp.where(valid, y, jnp.inf)),
            _tile_max(jnp.where(valid, y, -jnp.inf)))


def _ema_scale_update(cur_min, cur_max, it_ref, tminb_ref, tmaxb_ref,
                      decay, log_decay, n_levels):
    """FakeLinearQuantization scalar bookkeeping (SYMMETRIC mode), on (1,1) f32 vregs."""
    it_new = it_ref[...] + 1.0
    tminb_new = tminb_ref[...] * decay + (1.0 - decay) * cur_min
    tmaxb_new = tmaxb_ref[...] * decay + (1.0 - decay) * cur_max
    corr = 1.0 - jnp.exp(it_new * log_decay)            # 1 - decay**iter_count (EUP exp)
    tmin_new = tminb_new / corr
    tmax_new = tmaxb_new / corr
    max_abs = jnp.maximum(jnp.abs(tmin_new), jnp.abs(tmax_new))
    sat = jnp.where(max_abs == 0.0, n_levels, max_abs)  # distiller: sat_val[sat_val==0]=n
    scale_new = n_levels / sat
    zp_new = jnp.zeros_like(scale_new)                   # SYMMETRIC -> zero_point == 0
    return it_new, tminb_new, tmin_new, tmaxb_new, tmax_new, scale_new, zp_new, max_abs


def _fake_quant(y, max_abs, scale):
    """clamp + linear_quantize + linear_dequantize, SYMMETRIC (zero_point == 0)."""
    # Lower clamp is redundant: y >= 0 after ReLU and -max_abs <= 0.
    y = jnp.minimum(y, max_abs)
    # TODO(synk): distiller divides by scale when dequantizing; reciprocal-multiply
    # differs by ~1 ulp but keeps the elementwise path cheap.
    return jnp.round(y * scale) * (1.0 / scale)


# ----------------------------------------------------------------------------
# Kernel A: ReLU fused with the global min/max reduction; the last grid step runs the
# EMA / scale epilogue in-kernel and emits the full updated state as seven (1,1) outputs.
# ----------------------------------------------------------------------------
def _make_reduce_update_kernel(block_rows, cols, n_blocks, total, mask_last,
                               decay, log_decay, n_levels):
    block_elems = block_rows * cols

    def kernel(it_ref, tminb_ref, tmaxb_ref, x_ref,
               it_out, tminb_out, tmin_out, tmaxb_out, tmax_out, scale_out, zp_out,
               min_acc, max_acc):
        i = pl.program_id(0)
        y = jnp.maximum(x_ref[...].astype(jnp.float32), 0.0)    # wrapped module = ReLU

        def accum(tile_min, tile_max):
            @pl.when(i == 0)
            def _():
                min_acc[...] = tile_min
                max_acc[...] = tile_max

            @pl.when(i > 0)
            def _():
                min_acc[...] = jnp.minimum(min_acc[...], tile_min)
                max_acc[...] = jnp.maximum(max_acc[...], tile_max)

        if mask_last:
            # Mask only on the final (padded / ragged) block; all other blocks take the
            # plain reductions and stay at the HBM roofline.
            @pl.when(i < n_blocks - 1)
            def _():
                accum(_tile_min(y), _tile_max(y))

            @pl.when(i == n_blocks - 1)
            def _():
                tmin_m, tmax_m = _masked_tile_minmax(
                    y, i * block_elems, total, (block_rows, cols))
                accum(tmin_m, tmax_m)
        else:
            accum(_tile_min(y), _tile_max(y))

        # Epilogue on the final step: EMA update + symmetric quant params, all in-kernel
        # so no host-side scalar glue sits between the two pallas_calls.
        @pl.when(i == n_blocks - 1)
        def _():
            (it_new, tminb_new, tmin_new, tmaxb_new, tmax_new,
             scale_new, zp_new, _unused) = _ema_scale_update(
                 min_acc[...], max_acc[...], it_ref, tminb_ref, tmaxb_ref,
                 decay, log_decay, n_levels)
            it_out[...] = it_new
            tminb_out[...] = tminb_new
            tmin_out[...] = tmin_new
            tmaxb_out[...] = tmaxb_new
            tmax_out[...] = tmax_new
            scale_out[...] = scale_new
            zp_out[...] = zp_new

    return kernel


# ----------------------------------------------------------------------------
# Kernel B: ReLU (recomputed) + clamp + fake quantize/dequantize. Used for the second
# training pass and for eval mode. Range/scale arrive as (1,1) arrays (from kernel A's
# outputs in training, or the stored buffers in eval) and are broadcast per block.
# ----------------------------------------------------------------------------
def _quant_kernel(tmin_ref, tmax_ref, scale_ref, x_ref, o_ref):
    max_abs = jnp.maximum(jnp.abs(tmin_ref[...]), jnp.abs(tmax_ref[...]))   # (1,1)
    scale = scale_ref[...]                                                   # (1,1)
    y = jnp.maximum(x_ref[...].astype(jnp.float32), 0.0)                     # ReLU
    o_ref[...] = _fake_quant(y, max_abs, scale).astype(o_ref.dtype)


# ----------------------------------------------------------------------------
# Fused single-pass kernel (training, VMEM-resident activations): ReLU + min/max +
# EMA/scale + fake quantize, one HBM read and one HBM write.
# ----------------------------------------------------------------------------
def _make_fused_kernel(rows, cols, total, needs_mask, decay, log_decay, n_levels):
    def kernel(it_ref, tminb_ref, tmaxb_ref, x_ref,
               o_ref, it_out, tminb_out, tmin_out, tmaxb_out, tmax_out, scale_out, zp_out):
        y = jnp.maximum(x_ref[...].astype(jnp.float32), 0.0)    # wrapped module = ReLU
        if needs_mask:
            cur_min, cur_max = _masked_tile_minmax(y, 0, total, (rows, cols))
        else:
            cur_min, cur_max = _tile_min(y), _tile_max(y)
        (it_new, tminb_new, tmin_new, tmaxb_new, tmax_new,
         scale_new, zp_new, max_abs) = _ema_scale_update(
             cur_min, cur_max, it_ref, tminb_ref, tmaxb_ref, decay, log_decay, n_levels)
        o_ref[...] = _fake_quant(y, max_abs, scale_new).astype(o_ref.dtype)
        it_out[...] = it_new
        tminb_out[...] = tminb_new
        tmin_out[...] = tmin_new
        tmaxb_out[...] = tmaxb_new
        tmax_out[...] = tmax_new
        scale_out[...] = scale_new
        zp_out[...] = zp_new

    return kernel


def fake_quantization_wrapper_forward(x, state, num_bits=NUM_BITS, ema_decay=EMA_DECAY,
                                      training=True, fuse_max_f32_bytes=FUSE_MAX_F32_BYTES):
    orig_shape = x.shape
    orig_dtype = x.dtype
    total = int(x.size)

    x_flat = x.reshape(-1)                    # metadata-only reshape (row-major contiguous)
    padded_total = -(-total // LANES) * LANES
    needs_pad = padded_total != total
    if needs_pad:
        # TODO(synk): shapes not divisible by 128 take a pad+slice copy; typical NCHW
        # activations never hit this path.
        x_flat = jnp.pad(x_flat, (0, padded_total - total))

    cols = LANES
    rows = padded_total // cols
    x2d = x_flat.reshape(rows, cols)

    decay = float(ema_decay)
    log_decay = math.log(decay)
    n_levels = float(2 ** (num_bits - 1) - 1)

    scalar_shape = jax.ShapeDtypeStruct((1, 1), jnp.float32)
    scalar_spec = pl.BlockSpec((1, 1), lambda i: (0, 0))

    def _cparams(sem):
        return pltpu.CompilerParams(dimension_semantics=sem, vmem_limit_bytes=VMEM_LIMIT)

    def quantize_pass(tmin, tmax, scale):
        block_rows, n_blocks = _block_rows_for(rows, QUANT_BLOCK_BYTES)
        return pl.pallas_call(
            _quant_kernel,
            out_shape=jax.ShapeDtypeStruct((rows, cols), orig_dtype),
            grid=(n_blocks,),
            in_specs=[scalar_spec, scalar_spec, scalar_spec,
                      pl.BlockSpec((block_rows, cols), lambda i: (i, 0))],
            out_specs=pl.BlockSpec((block_rows, cols), lambda i: (i, 0)),
            compiler_params=_cparams(("parallel",)),
            # TODO(synk): could alias x2d -> out via input_output_aliases (in-place fake
            # quant) when x is dead after this op; not done since activations are usually
            # kept for the backward pass.
        )(tmin, tmax, scale, x2d)

    if training:
        if padded_total * 4 <= fuse_max_f32_bytes:
            # Single-pass fused kernel: one HBM read + one write, scalar bookkeeping in-kernel.
            full_in = pl.BlockSpec((rows, cols), lambda i: (0, 0))
            full_out = pl.BlockSpec((rows, cols), lambda i: (0, 0))
            kern = _make_fused_kernel(rows, cols, total, needs_pad,
                                      decay, log_decay, n_levels)
            outs = pl.pallas_call(
                kern,
                out_shape=(jax.ShapeDtypeStruct((rows, cols), orig_dtype),)
                          + (scalar_shape,) * 7,
                grid=(1,),
                in_specs=[scalar_spec, scalar_spec, scalar_spec, full_in],
                out_specs=(full_out,) + (scalar_spec,) * 7,
                compiler_params=_cparams(("arbitrary",)),
            )(state["iter_count"], state["tracked_min_biased"],
              state["tracked_max_biased"], x2d)
            out2d, it_n, tminb_n, tmin_n, tmaxb_n, tmax_n, scale_n, zp_n = outs
        else:
            # Pass 1: ReLU + global min/max with in-kernel EMA/scale epilogue.
            block_rows, n_blocks = _block_rows_for(rows, REDUCE_BLOCK_BYTES)
            mask_last = needs_pad or (rows % block_rows != 0)
            kern_a = _make_reduce_update_kernel(block_rows, cols, n_blocks, total,
                                                mask_last, decay, log_decay, n_levels)
            # TODO(synk): on v7x a 2-way core-parallel partial reduction would use both
            # TensorCores; kept the single-accumulator "arbitrary" form for portability.
            (it_n, tminb_n, tmin_n, tmaxb_n, tmax_n, scale_n, zp_n) = pl.pallas_call(
                kern_a,
                out_shape=(scalar_shape,) * 7,
                grid=(n_blocks,),
                in_specs=[scalar_spec, scalar_spec, scalar_spec,
                          pl.BlockSpec((block_rows, cols), lambda i: (i, 0))],
                out_specs=(scalar_spec,) * 7,
                scratch_shapes=[pltpu.VMEM((1, 1), jnp.float32),
                                pltpu.VMEM((1, 1), jnp.float32)],
                compiler_params=_cparams(("arbitrary",)),
            )(state["iter_count"], state["tracked_min_biased"],
              state["tracked_max_biased"], x2d)
            # Pass 2: ReLU (recomputed, free) + clamp + fake quantize/dequantize.
            out2d = quantize_pass(tmin_n, tmax_n, scale_n)

        new_state = {
            "iter_count": it_n,
            "tracked_min_biased": tminb_n,
            "tracked_min": tmin_n,
            "tracked_max_biased": tmaxb_n,
            "tracked_max": tmax_n,
            "scale": scale_n,
            "zero_point": zp_n,
        }
    else:
        # Eval: no EMA update and no reduction pass; quantize with the stored buffers.
        out2d = quantize_pass(state["tracked_min"], state["tracked_max"], state["scale"])
        new_state = dict(state)

    if needs_pad:
        res = out2d.reshape(-1)[:total].reshape(orig_shape)
    else:
        res = out2d.reshape(orig_shape)
    return res, new_state


# ----------------------------------------------------------------------------
# Self-test
# ----------------------------------------------------------------------------
def _reference_scalars(y, num_bits=NUM_BITS, decay=EMA_DECAY, step=1.0):
    cmin = jnp.min(y)
    cmax = jnp.max(y)
    corr = 1.0 - decay ** step
    tmin = (1.0 - decay) * cmin / corr
    tmax = (1.0 - decay) * cmax / corr
    max_abs = jnp.maximum(jnp.abs(tmin), jnp.abs(tmax))
    n_lv = float(2 ** (num_bits - 1) - 1)
    scale = jnp.where(max_abs == 0.0, 1.0, n_lv / jnp.where(max_abs == 0.0, 1.0, max_abs))
    return tmin, tmax, scale


def _check_forward(x, res, state_used):
    """Check the elementwise fake-quant path against the kernel's own returned range/scale."""
    y = jnp.maximum(x, 0.0)
    scale_k = state_used["scale"][0, 0]
    mabs_k = jnp.maximum(jnp.abs(state_used["tracked_min"][0, 0]),
                         jnp.abs(state_used["tracked_max"][0, 0]))
    ref = jnp.round(jnp.clip(y, -mabs_k, mabs_k) * scale_k) / scale_k
    assert res.shape == x.shape and res.dtype == x.dtype
    assert jnp.allclose(res, ref, atol=1e-5, rtol=1e-5), "fake-quant output mismatch"


if __name__ == "__main__":
    key = jax.random.PRNGKey(0)
    # NCHW activation, as PyTorch would feed the wrapped (ReLU) module.
    x = jax.random.normal(key, (2, 4, 16, 16), dtype=jnp.float32)
    state = init_fake_quant_state()

    # 1) Training forward (fused single-pass path for this size).
    res, new_state = fake_quantization_wrapper_forward(x, state, training=True)
    res = jax.block_until_ready(res)
    _check_forward(x, res, new_state)

    # EMA / scale statistics vs a pure-JAX reference (loose tolerance: in-kernel
    # decay**step uses the EUP exp, the host reference uses python pow).
    tmin_r, tmax_r, scale_r = _reference_scalars(jnp.maximum(x, 0.0))
    assert jnp.allclose(new_state["iter_count"][0, 0], 1.0)
    assert jnp.allclose(new_state["tracked_min"][0, 0], tmin_r, rtol=5e-3, atol=1e-6)
    assert jnp.allclose(new_state["tracked_max"][0, 0], tmax_r, rtol=5e-3, atol=1e-6)
    assert jnp.allclose(new_state["scale"][0, 0], scale_r, rtol=5e-3)

    # 2) Two-pass (reduce + quantize) path, forced via a zero fusion threshold.
    res2, ns2 = fake_quantization_wrapper_forward(x, state, training=True,
                                                  fuse_max_f32_bytes=0)
    res2 = jax.block_until_ready(res2)
    _check_forward(x, res2, ns2)
    assert jnp.allclose(ns2["scale"][0, 0], scale_r, rtol=5e-3)

    # 3) Eval mode: reduction pass skipped, stored buffers used.
    res3, ns3 = fake_quantization_wrapper_forward(x, new_state, training=False)
    res3 = jax.block_until_ready(res3)
    _check_forward(x, res3, new_state)

    # 4) Non-128-divisible, all-positive input exercises the masked padded path
    #    (pad zeros must not leak into the tracked minimum).
    x_odd = jnp.abs(jax.random.normal(jax.random.PRNGKey(1), (3, 5, 7), jnp.float32)) + 0.5
    res4, ns4 = fake_quantization_wrapper_forward(x_odd, state, training=True)
    res4 = jax.block_until_ready(res4)
    _check_forward(x_odd, res4, ns4)
    tmin4_r, _, _ = _reference_scalars(jnp.maximum(x_odd, 0.0))
    assert jnp.allclose(ns4["tracked_min"][0, 0], tmin4_r, rtol=5e-3, atol=1e-6)
    assert float(ns4["tracked_min"][0, 0]) > 0.0   # would be 0 if pad zeros leaked in

    res5, ns5 = fake_quantization_wrapper_forward(x_odd, state, training=True,
                                                  fuse_max_f32_bytes=0)
    res5 = jax.block_until_ready(res5)
    _check_forward(x_odd, res5, ns5)
    assert float(ns5["tracked_min"][0, 0]) > 0.0

    print("KERNEL_OK")
</pallas_src>

<mosaic_0001>
module attributes {stable_mosaic.version = 11 : i64} {
  func.func @kernel(%arg0: i32, %arg1: memref<1x1xf32, #tpu.memory_space<vmem>>, %arg2: memref<1x1xf32, #tpu.memory_space<vmem>>, %arg3: memref<1x1xf32, #tpu.memory_space<vmem>>, %arg4: memref<16x128xf32, #tpu.memory_space<vmem>>, %arg5: memref<16x128xf32, #tpu.memory_space<vmem>>, %arg6: memref<1x1xf32, #tpu.memory_space<vmem>>, %arg7: memref<1x1xf32, #tpu.memory_space<vmem>>, %arg8: memref<1x1xf32, #tpu.memory_space<vmem>>, %arg9: memref<1x1xf32, #tpu.memory_space<vmem>>, %arg10: memref<1x1xf32, #tpu.memory_space<vmem>>, %arg11: memref<1x1xf32, #tpu.memory_space<vmem>>, %arg12: memref<1x1xf32, #tpu.memory_space<vmem>>) attributes {dimension_semantics = [#tpu.dimension_semantics<arbitrary>], iteration_bounds = array<i64: 1>, scalar_prefetch = 0 : i64, scratch_operands = 0 : i64, tpu.core_type = #tpu.core_type<tc>, window_params = [{pipeline_mode = #tpu.pipeline_mode<synchronous>, transform_indices = @transform_0, window_bounds = array<i64: 1, 1>}, {pipeline_mode = #tpu.pipeline_mode<synchronous>, transform_indices = @transform_1, window_bounds = array<i64: 1, 1>}, {pipeline_mode = #tpu.pipeline_mode<synchronous>, transform_indices = @transform_2, window_bounds = array<i64: 1, 1>}, {pipeline_mode = #tpu.pipeline_mode<synchronous>, transform_indices = @transform_3, window_bounds = array<i64: 16, 128>}, {pipeline_mode = #tpu.pipeline_mode<synchronous>, transform_indices = @transform_4, window_bounds = array<i64: 16, 128>}, {pipeline_mode = #tpu.pipeline_mode<synchronous>, transform_indices = @transform_5, window_bounds = array<i64: 1, 1>}, {pipeline_mode = #tpu.pipeline_mode<synchronous>, transform_indices = @transform_6, window_bounds = array<i64: 1, 1>}, {pipeline_mode = #tpu.pipeline_mode<synchronous>, transform_indices = @transform_7, window_bounds = array<i64: 1, 1>}, {pipeline_mode = #tpu.pipeline_mode<synchronous>, transform_indices = @transform_8, window_bounds = array<i64: 1, 1>}, {pipeline_mode = #tpu.pipeline_mode<synchronous>, transform_indices = @transform_9, window_bounds = array<i64: 1, 1>}, {pipeline_mode = #tpu.pipeline_mode<synchronous>, transform_indices = @transform_10, window_bounds = array<i64: 1, 1>}, {pipeline_mode = #tpu.pipeline_mode<synchronous>, transform_indices = @transform_11, window_bounds = array<i64: 1, 1>}]} {
    %c0 = arith.constant 0 : index
    %c0_0 = arith.constant 0 : index
    %0 = vector.load %arg4[%c0, %c0_0] : memref<16x128xf32, #tpu.memory_space<vmem>>, vector<16x128xf32>
    %cst = arith.constant 0.000000e+00 : f32
    %1 = vector.broadcast %cst : f32 to vector<16x128xf32>
    %2 = arith.maximumf %0, %1 : vector<16x128xf32>
    %cst_1 = arith.constant dense<0x7F800000> : vector<16xf32>
    %3 = vector.multi_reduction <minimumf>, %2, %cst_1 [1] : vector<16x128xf32> to vector<16xf32>
    %4 = vector.shape_cast %3 : vector<16xf32> to vector<16x1xf32>
    %cst_2 = arith.constant dense<0x7F800000> : vector<1xf32>
    %5 = vector.multi_reduction <minimumf>, %4, %cst_2 [0] : vector<16x1xf32> to vector<1xf32>
    %6 = vector.shape_cast %5 : vector<1xf32> to vector<1x1xf32>
    %cst_3 = arith.constant dense<0xFF800000> : vector<16xf32>
    %7 = vector.multi_reduction <maximumf>, %2, %cst_3 [1] : vector<16x128xf32> to vector<16xf32>
    %8 = vector.shape_cast %7 : vector<16xf32> to vector<16x1xf32>
    %cst_4 = arith.constant dense<0xFF800000> : vector<1xf32>
    %9 = vector.multi_reduction <maximumf>, %8, %cst_4 [0] : vector<16x1xf32> to vector<1xf32>
    %10 = vector.shape_cast %9 : vector<1xf32> to vector<1x1xf32>
    %c0_5 = arith.constant 0 : index
    %c0_6 = arith.constant 0 : index
    %11 = vector.load %arg1[%c0_5, %c0_6] : memref<1x1xf32, #tpu.memory_space<vmem>>, vector<1x1xf32>
    %cst_7 = arith.constant 1.000000e+00 : f32
    %12 = vector.broadcast %cst_7 : f32 to vector<1x1xf32>
    %13 = arith.addf %11, %12 : vector<1x1xf32>
    %c0_8 = arith.constant 0 : index
    %c0_9 = arith.constant 0 : index
    %14 = vector.load %arg2[%c0_8, %c0_9] : memref<1x1xf32, #tpu.memory_space<vmem>>, vector<1x1xf32>
    %cst_10 = arith.constant 9.990000e-01 : f32
    %15 = vector.broadcast %cst_10 : f32 to vector<1x1xf32>
    %16 = arith.mulf %14, %15 : vector<1x1xf32>
    %cst_11 = arith.constant 1.000000e-03 : f32
    %17 = vector.broadcast %cst_11 : f32 to vector<1x1xf32>
    %18 = arith.mulf %17, %6 : vector<1x1xf32>
    %19 = arith.addf %16, %18 : vector<1x1xf32>
    %c0_12 = arith.constant 0 : index
    %c0_13 = arith.constant 0 : index
    %20 = vector.load %arg3[%c0_12, %c0_13] : memref<1x1xf32, #tpu.memory_space<vmem>>, vector<1x1xf32>
    %cst_14 = arith.constant 9.990000e-01 : f32
    %21 = vector.broadcast %cst_14 : f32 to vector<1x1xf32>
    %22 = arith.mulf %20, %21 : vector<1x1xf32>
    %cst_15 = arith.constant 1.000000e-03 : f32
    %23 = vector.broadcast %cst_15 : f32 to vector<1x1xf32>
    %24 = arith.mulf %23, %10 : vector<1x1xf32>
    %25 = arith.addf %22, %24 : vector<1x1xf32>
    %cst_16 = arith.constant -0.00100050028 : f32
    %26 = vector.broadcast %cst_16 : f32 to vector<1x1xf32>
    %27 = arith.mulf %13, %26 : vector<1x1xf32>
    %28 = math.exp %27 : vector<1x1xf32>
    %cst_17 = arith.constant 1.000000e+00 : f32
    %29 = vector.broadcast %cst_17 : f32 to vector<1x1xf32>
    %30 = arith.subf %29, %28 : vector<1x1xf32>
    %31 = arith.divf %19, %30 : vector<1x1xf32>
    %32 = arith.divf %25, %30 : vector<1x1xf32>
    %33 = math.absf %31 : vector<1x1xf32>
    %34 = math.absf %32 : vector<1x1xf32>
    %35 = arith.maximumf %33, %34 : vector<1x1xf32>
    %cst_18 = arith.constant 0.000000e+00 : f32
    %36 = vector.broadcast %cst_18 : f32 to vector<1x1xf32>
    %37 = arith.cmpf oeq, %35, %36 : vector<1x1xf32>
    %cst_19 = arith.constant 1.270000e+02 : f32
    %38 = vector.broadcast %cst_19 : f32 to vector<1x1xf32>
    %39 = arith.select %37, %38, %35 : vector<1x1xi1>, vector<1x1xf32>
    %cst_20 = arith.constant 1.270000e+02 : f32
    %40 = vector.broadcast %cst_20 : f32 to vector<1x1xf32>
    %41 = arith.divf %40, %39 : vector<1x1xf32>
    %cst_21 = arith.constant 0.000000e+00 : f32
    %42 = vector.broadcast %cst_21 : f32 to vector<1x1xf32>
    %43 = vector.broadcast %35 : vector<1x1xf32> to vector<16x128xf32>
    %44 = arith.minimumf %2, %43 : vector<16x128xf32>
    %45 = vector.broadcast %41 : vector<1x1xf32> to vector<16x128xf32>
    %46 = arith.mulf %44, %45 : vector<16x128xf32>
    %47 = math.roundeven %46 : vector<16x128xf32>
    %cst_22 = arith.constant 1.000000e+00 : f32
    %48 = vector.broadcast %cst_22 : f32 to vector<1x1xf32>
    %49 = arith.divf %48, %41 : vector<1x1xf32>
    %50 = vector.broadcast %49 : vector<1x1xf32> to vector<16x128xf32>
    %51 = arith.mulf %47, %50 : vector<16x128xf32>
    %c0_23 = arith.constant 0 : index
    %c0_24 = arith.constant 0 : index
    %52 = vector.load %arg5[%c0_23, %c0_24] : memref<16x128xf32, #tpu.memory_space<vmem>>, vector<16x128xf32>
    tpu.vector_store %arg5[%c0_23, %c0_24], %51 {strides = array<i32>} : memref<16x128xf32, #tpu.memory_space<vmem>>, vector<16x128xf32>,
    %c0_25 = arith.constant 0 : index
    %c0_26 = arith.constant 0 : index
    %53 = vector.load %arg6[%c0_25, %c0_26] : memref<1x1xf32, #tpu.memory_space<vmem>>, vector<1x1xf32>
    tpu.vector_store %arg6[%c0_25, %c0_26], %13 {strides = array<i32>} : memref<1x1xf32, #tpu.memory_space<vmem>>, vector<1x1xf32>,
    %c0_27 = arith.constant 0 : index
    %c0_28 = arith.constant 0 : index
    %54 = vector.load %arg7[%c0_27, %c0_28] : memref<1x1xf32, #tpu.memory_space<vmem>>, vector<1x1xf32>
    tpu.vector_store %arg7[%c0_27, %c0_28], %19 {strides = array<i32>} : memref<1x1xf32, #tpu.memory_space<vmem>>, vector<1x1xf32>,
    %c0_29 = arith.constant 0 : index
    %c0_30 = arith.constant 0 : index
    %55 = vector.load %arg8[%c0_29, %c0_30] : memref<1x1xf32, #tpu.memory_space<vmem>>, vector<1x1xf32>
    tpu.vector_store %arg8[%c0_29, %c0_30], %31 {strides = array<i32>} : memref<1x1xf32, #tpu.memory_space<vmem>>, vector<1x1xf32>,
    %c0_31 = arith.constant 0 : index
    %c0_32 = arith.constant 0 : index
    %56 = vector.load %arg9[%c0_31, %c0_32] : memref<1x1xf32, #tpu.memory_space<vmem>>, vector<1x1xf32>
    tpu.vector_store %arg9[%c0_31, %c0_32], %25 {strides = array<i32>} : memref<1x1xf32, #tpu.memory_space<vmem>>, vector<1x1xf32>,
    %c0_33 = arith.constant 0 : index
    %c0_34 = arith.constant 0 : index
    %57 = vector.load %arg10[%c0_33, %c0_34] : memref<1x1xf32, #tpu.memory_space<vmem>>, vector<1x1xf32>
    tpu.vector_store %arg10[%c0_33, %c0_34], %32 {strides = array<i32>} : memref<1x1xf32, #tpu.memory_space<vmem>>, vector<1x1xf32>,
    %c0_35 = arith.constant 0 : index
    %c0_36 = arith.constant 0 : index
    %58 = vector.load %arg11[%c0_35, %c0_36] : memref<1x1xf32, #tpu.memory_space<vmem>>, vector<1x1xf32>
    tpu.vector_store %arg11[%c0_35, %c0_36], %41 {strides = array<i32>} : memref<1x1xf32, #tpu.memory_space<vmem>>, vector<1x1xf32>,
    %c0_37 = arith.constant 0 : index
    %c0_38 = arith.constant 0 : index
    %59 = vector.load %arg12[%c0_37, %c0_38] : memref<1x1xf32, #tpu.memory_space<vmem>>, vector<1x1xf32>
    tpu.vector_store %arg12[%c0_37, %c0_38], %42 {strides = array<i32>} : memref<1x1xf32, #tpu.memory_space<vmem>>, vector<1x1xf32>,
    return
  }
  func.func @transform_0(%arg0: i32) -> (i32, i32) {
    %c0_i32 = arith.constant 0 : i32
    %c0_i32_0 = arith.constant 0 : i32
    %c0_i32_1 = arith.constant 0 : i32
    return %c0_i32, %c0_i32_0 : i32, i32
  }
  func.func @transform_1(%arg0: i32) -> (i32, i32) {
    %c0_i32 = arith.constant 0 : i32
    %c0_i32_0 = arith.constant 0 : i32
    %c0_i32_1 = arith.constant 0 : i32
    return %c0_i32, %c0_i32_0 : i32, i32
  }
  func.func @transform_2(%arg0: i32) -> (i32, i32) {
    %c0_i32 = arith.constant 0 : i32
    %c0_i32_0 = arith.constant 0 : i32
    %c0_i32_1 = arith.constant 0 : i32
    return %c0_i32, %c0_i32_0 : i32, i32
  }
  func.func @transform_3(%arg0: i32) -> (i32, i32) {
    %c0_i32 = arith.constant 0 : i32
    %c0_i32_0 = arith.constant 0 : i32
    %c0_i32_1 = arith.constant 0 : i32
    return %c0_i32, %c0_i32_0 : i32, i32
  }
  func.func @transform_4(%arg0: i32) -> (i32, i32) {
    %c0_i32 = arith.constant 0 : i32
    %c0_i32_0 = arith.constant 0 : i32
    %c0_i32_1 = arith.constant 0 : i32
    return %c0_i32, %c0_i32_0 : i32, i32
  }
  func.func @transform_5(%arg0: i32) -> (i32, i32) {
    %c0_i32 = arith.constant 0 : i32
    %c0_i32_0 = arith.constant 0 : i32
    %c0_i32_1 = arith.constant 0 : i32
    return %c0_i32, %c0_i32_0 : i32, i32
  }
  func.func @transform_6(%arg0: i32) -> (i32, i32) {
    %c0_i32 = arith.constant 0 : i32
    %c0_i32_0 = arith.constant 0 : i32
    %c0_i32_1 = arith.constant 0 : i32
    return %c0_i32, %c0_i32_0 : i32, i32
  }
  func.func @transform_7(%arg0: i32) -> (i32, i32) {
    %c0_i32 = arith.constant 0 : i32
    %c0_i32_0 = arith.constant 0 : i32
    %c0_i32_1 = arith.constant 0 : i32
    return %c0_i32, %c0_i32_0 : i32, i32
  }
  func.func @transform_8(%arg0: i32) -> (i32, i32) {
    %c0_i32 = arith.constant 0 : i32
    %c0_i32_0 = arith.constant 0 : i32
    %c0_i32_1 = arith.constant 0 : i32
    return %c0_i32, %c0_i32_0 : i32, i32
  }
  func.func @transform_9(%arg0: i32) -> (i32, i32) {
    %c0_i32 = arith.constant 0 : i32
    %c0_i32_0 = arith.constant 0 : i32
    %c0_i32_1 = arith.constant 0 : i32
    return %c0_i32, %c0_i32_0 : i32, i32
  }
  func.func @transform_10(%arg0: i32) -> (i32, i32) {
    %c0_i32 = arith.constant 0 : i32
    %c0_i32_0 = arith.constant 0 : i32
    %c0_i32_1 = arith.constant 0 : i32
    return %c0_i32, %c0_i32_0 : i32, i32
  }
  func.func @transform_11(%arg0: i32) -> (i32, i32) {
    %c0_i32 = arith.constant 0 : i32
    %c0_i32_0 = arith.constant 0 : i32
    %c0_i32_1 = arith.constant 0 : i32
    return %c0_i32, %c0_i32_0 : i32, i32
  }
}

</mosaic_0001>

<llo_original>
// kernel: tpu_custom_call.1
$region0: #{tpu_custom_call.1}
  #allocation0 [shape = 'u32[]', space=smem, size = 0x4, offset = 0x4, fixed_abs, tag = 'smem constant byte address 0x4 - core index']
  #allocation1 [shape = 'u32[72,128]{1,0:T(1,128)}', space=vmem, size = 0x9000, scoped, tag = 'internal scratch']
  #allocation2 [shape = 'f32[1,1]{1,0:T(1,128)S(1)}', space=vmem, size = 0x200, scoped, tag = 'scoped memory for tpu_custom_call.1']
  #allocation3 [shape = 'f32[1,1]{1,0:T(1,128)S(1)}', space=vmem, size = 0x200, scoped, tag = 'scoped memory for tpu_custom_call.1']
  #allocation4 [shape = 'f32[1,1]{1,0:T(1,128)S(1)}', space=vmem, size = 0x200, scoped, tag = 'scoped memory for tpu_custom_call.1']
  %s0 = inlined_call_operand.<no memory space> [shape: f32[1,1], index: 0, kind: input, shape index: {}]
  %s1 = inlined_call_operand.<no memory space> [shape: f32[1,1], index: 1, kind: input, shape index: {}]
  %s2 = inlined_call_operand.<no memory space> [shape: f32[1,1], index: 2, kind: input, shape index: {}]
  %s3 = inlined_call_operand.hbm [shape: f32[16,128], index: 3, kind: input, shape index: {}]
  %s4 = inlined_call_operand.hbm [shape: f32[16,128], index: 4, kind: output, shape index: {0}]
  %s5 = inlined_call_operand.hbm [shape: f32[1,1], index: 5, kind: output, shape index: {1}]
  %s6 = inlined_call_operand.hbm [shape: f32[1,1], index: 6, kind: output, shape index: {2}]
  %s7 = inlined_call_operand.hbm [shape: f32[1,1], index: 7, kind: output, shape index: {3}]
  %s8 = inlined_call_operand.hbm [shape: f32[1,1], index: 8, kind: output, shape index: {4}]
  %s9 = inlined_call_operand.hbm [shape: f32[1,1], index: 9, kind: output, shape index: {5}]
  %s10 = inlined_call_operand.hbm [shape: f32[1,1], index: 10, kind: output, shape index: {6}]
  %s11 = inlined_call_operand.hbm [shape: f32[1,1], index: 11, kind: output, shape index: {7}]
  %12 = xla_tuple %s4, %s5, %s6, %s7, %s8, %s9, %s10, %s11
  %s13 = sld [smem:[#allocation0]]
  $region86: #{tpu_custom_call.1} parent=0
    _
  %s15 = ssub.s32 1, %s13
  %s16 = scalar_select 0, %s15, %s13
  %v17 = vstv %s0
  %18 = vst [vmem:[#allocation2] sm:$0x1] %v17
  %v19 = vstv %s1
  %20 = vst [vmem:[#allocation3] sm:$0x1] %v19
  %v21 = vstv %s2
  %22 = vst [vmem:[#allocation4] sm:$0x1] %v21
  $region1: #{tpu_custom_call.1} parent=0
    #allocation5 [shape = 'u8[8192]{0}', space=vmem, size = 0x2000, scoped, tag = 'input window, operand 3, single buffered']
    #allocation6 [shape = 's32[1]{0}', space=sflag, size = 0x4, scoped, tag = 'scoped memory for tpu_custom_call.1']
    #allocation7 [shape = 's32[1]{0}', space=sflag, size = 0x4, scoped, tag = 'scoped memory for tpu_custom_call.1']
    #allocation8 [shape = 'u8[8192]{0}', space=vmem, size = 0x2000, scoped, tag = 'output window, operand 0, single buffered']
    #allocation9 [shape = 'u8[512]{0}', space=vmem, size = 0x400, scoped, tag = 'output window, operand 1, single buffered']
    #allocation10 [shape = 's32[1]{0}', space=sflag, size = 0x4, scoped, tag = 'scoped memory for tpu_custom_call.1']
    #allocation11 [shape = 'u8[512]{0}', space=vmem, size = 0x400, scoped, tag = 'output window, operand 2, single buffered']
    #allocation12 [shape = 'u8[512]{0}', space=vmem, size = 0x400, scoped, tag = 'output window, operand 3, single buffered']
    #allocation13 [shape = 's32[1]{0}', space=sflag, size = 0x4, scoped, tag = 'scoped memory for tpu_custom_call.1']
    #allocation14 [shape = 'u8[512]{0}', space=vmem, size = 0x400, scoped, tag = 'output window, operand 4, single buffered']
    #allocation15 [shape = 'u8[512]{0}', space=vmem, size = 0x400, scoped, tag = 'output window, operand 5, single buffered']
    #allocation16 [shape = 's32[1]{0}', space=sflag, size = 0x4, scoped, tag = 'scoped memory for tpu_custom_call.1']
    #allocation17 [shape = 'u8[512]{0}', space=vmem, size = 0x400, scoped, tag = 'output window, operand 6, single buffered']
    #allocation18 [shape = 'u8[512]{0}', space=vmem, size = 0x400, scoped, tag = 'output window, operand 7, single buffered']
    #allocation19 [shape = 's32[1]{0}', space=sflag, size = 0x4, scoped, tag = 'scoped memory for tpu_custom_call.1']
    %23 = vsyncpa [#allocation6], 0
    %24 = vsyncpa [#allocation7], 0
    %25 = vsyncpa [#allocation10], 0
    %26 = vsyncpa [#allocation13], 0
    %27 = vsyncpa [#allocation16], 0
    %28 = vsyncpa [#allocation19], 0
    // Predicated region
    $region2: #{tpu_custom_call.1} parent=1 // pred_check
      _
    $region3: #{tpu_custom_call.1} parent=1 // pred_check_branch
      %30 = sbr.rel (0) target = $region5
    $region4: #{tpu_custom_call.1} parent=1 // pred_region
      _
    $region5: #{tpu_custom_call.1} parent=1 // pred_fallthru
      _
    // Predicated region
    $region6: #{tpu_custom_call.1} parent=1 // pred_check
      _
    $region7: #{tpu_custom_call.1} parent=1 // pred_check_branch
      %32 = sbr.rel (0) target = $region9
    $region8: #{tpu_custom_call.1} parent=1 // pred_region
      _
    $region9: #{tpu_custom_call.1} parent=1 // pred_fallthru
      _
    // Predicated region
    $region10: #{tpu_custom_call.1} parent=1 // pred_check
      _
    $region11: #{tpu_custom_call.1} parent=1 // pred_check_branch
      %34 = sbr.rel (0) target = $region13
    $region12: #{tpu_custom_call.1} parent=1 // pred_region
      _
    $region13: #{tpu_custom_call.1} parent=1 // pred_fallthru
      _
    // Predicated region
    $region14: #{tpu_custom_call.1} parent=1 // pred_check
      _
    $region15: #{tpu_custom_call.1} parent=1 // pred_check_branch
      %36 = sbr.rel (0) target = $region17
    $region16: #{tpu_custom_call.1} parent=1 // pred_region
      %38 = vsyncadd [#allocation6], 0
      %s39 = sshll.u32 %s3, 4
      %s40 = int_to_ptr.hbm [resolvable:$true] %s39
      %s41 = sshll.u32 [#allocation5], 4
      %s42 = int_to_ptr.vmem [resolvable:$true] %s41
      %47 = dma.hbm_to_vmem [thread:$0]  %s40, 256, %s42, [#allocation6], 128, 128, 8
    $region17: #{tpu_custom_call.1} parent=1 // pred_fallthru
      _
    // Predicated region
    $region18: #{tpu_custom_call.1} parent=1 // pred_check
      _
    $region19: #{tpu_custom_call.1} parent=1 // pred_check_branch
      %49 = sbr.rel (0) target = $region21
    $region20: #{tpu_custom_call.1} parent=1 // pred_region
      %51 = dma.done [#allocation6], 256
    $region21: #{tpu_custom_call.1} parent=1 // pred_fallthru
      _
    %v52 = vld [vmem:[#allocation5] sm:$0xff]
    %v53 = vld [vmem:[#allocation5 + $0x8] sm:$0xff]
    %v54 = vmax.f32 %v52, 0.0
    %v55 = vmax.f32 %v53, 0.0
    %56 = vmin.xlane.f32.xlu0 %v54
    %v57 = vpop.xlane.xlu0 %56
    %58 = vmin.xlane.f32.xlu0 %v55
    %v59 = vpop.xlane.xlu0 %58
    %v60 = vmin.f32 %v57, %v59
    %v61 = vrot.slane %v60, 4
    %v62 = vmin.f32 %v60, %v61
    %v63 = vrot.slane %v62, 2
    %v64 = vmin.f32 %v62, %v63
    %v65 = vrot.slane %v64, 1
    %v66 = vmin.f32 %v64, %v65
    %67 = vmax.xlane.f32.xlu0 %v54
    %v68 = vpop.xlane.xlu0 %67
    %69 = vmax.xlane.f32.xlu0 %v55
    %v70 = vpop.xlane.xlu0 %69
    %v71 = vmax.f32 %v68, %v70
    %v72 = vrot.slane %v71, 4
    %v73 = vmax.f32 %v71, %v72
    %v74 = vrot.slane %v73, 2
    %v75 = vmax.f32 %v73, %v74
    %v76 = vrot.slane %v75, 1
    %v77 = vmax.f32 %v75, %v76
    %v78 = vld [vmem:[#allocation2] sm:$0x1]
    %v79 = vadd.f32 %v78, 1.0
    %v80 = vld [vmem:[#allocation3] sm:$0x1]
    %v81 = vmul.f32 %v80, 0.999
    %v82 = vmul.f32 %v66, 0.001
    %v83 = vadd.f32 %v81, %v82
    %v84 = vld [vmem:[#allocation4] sm:$0x1]
    %v85 = vmul.f32 %v84, 0.999
    %v86 = vmul.f32 %v77, 0.001
    %v87 = vadd.f32 %v85, %v86
    %v88 = vmul.f32 %v79, -0.0010005003
    %v89 = vmul.f32 %v88, 1.442695
    %v90 = vpow.pop %v89
    %v91 = vsub.f32 1.0, %v90
    %v92 = vrcp.pop %v91
    %v93 = vmul.f32 %v91, %v92
    %v94 = vsub.f32 1.0, %v93
    %v95 = vmul.f32 %v92, %v94
    %v96 = vadd.f32 %v92, %v95
    %vm97 = vweird.f32 %v91
    %vm98 = vweird.f32 %v92
    %vm99 = vmor %vm97, %vm98
    %v100 = vsel %vm99, %v92, %v96
    %v101 = vand.u32 2147483647, %v91
    %vm102 = vcmp.eq.f32.partialorder %v101, 8.507059e+37
    %v103 = vand.u32 %v91, 2147483648
    %v104 = vor.u32 1.1754944e-38, %v103
    %v105 = vsel %vm102, %v104, %v100
    %v106 = vmul.f32 %v83, %v105
    %v107 = vmul.f32 %v87, %v105
    %v108 = vand.u32 2147483647, %v106
    %v109 = vand.u32 2147483647, %v107
    %v110 = vmax.f32 %v108, %v109
    %vm111 = vcmp.eq.f32.partialorder %v110, 0.0
    %v112 = vsel %vm111, 127.0, %v110
    %v113 = vrcp.pop %v112
    %v114 = vmul.f32 %v112, %v113
    %v115 = vsub.f32 1.0, %v114
    %v116 = vmul.f32 %v113, %v115
    %v117 = vadd.f32 %v113, %v116
    %vm118 = vweird.f32 %v112
    %vm119 = vweird.f32 %v113
    %vm120 = vmor %vm118, %vm119
    %v121 = vsel %vm120, %v113, %v117
    %v122 = vand.u32 2147483647, %v112
    %vm123 = vcmp.eq.f32.partialorder %v122, 8.507059e+37
    %v124 = vand.u32 %v112, 2147483648
    %v125 = vor.u32 1.1754944e-38, %v124
    %v126 = vsel %vm123, %v125, %v121
    %v127 = vmul.f32 127.0, %v126
    %v129 = vperm.slane %v110, 0
    %130 = vset.pattern.permute.xlu0 0
    %131 = vperm.xlu0 %130, %v129
    %v132 = vpop.permute.xlu0 %131
    %v134 = vmin.f32 %v54, %v132
    %v135 = vmin.f32 %v55, %v132
    %v137 = vperm.slane %v127, 0
    %138 = vset.pattern.permute.xlu0 0
    %139 = vperm.xlu0 %138, %v137
    %v140 = vpop.permute.xlu0 %139
    %v142 = vmul.f32 %v134, %v140
    %v143 = vmul.f32 %v135, %v140
    %v144 = vround.ne.pseudo %v142
    %v145 = vround.ne.pseudo %v143
    %v146 = vrcp.pop %v127
    %v147 = vmul.f32 %v127, %v146
    %v148 = vsub.f32 1.0, %v147
    %v149 = vmul.f32 %v146, %v148
    %v150 = vadd.f32 %v146, %v149
    %vm151 = vweird.f32 %v127
    %vm152 = vweird.f32 %v146
    %vm153 = vmor %vm151, %vm152
    %v154 = vsel %vm153, %v146, %v150
    %v155 = vand.u32 2147483647, %v127
    %vm156 = vcmp.eq.f32.partialorder %v155, 8.507059e+37
    %v157 = vand.u32 %v127, 2147483648
    %v158 = vor.u32 1.1754944e-38, %v157
    %v159 = vsel %vm156, %v158, %v154
    %v160 = vmul.f32 1.0, %v159
    %v162 = vperm.slane %v160, 0
    %163 = vset.pattern.permute.xlu0 0
    %164 = vperm.xlu0 %163, %v162
    %v165 = vpop.permute.xlu0 %164
    %v167 = vmul.f32 %v144, %v165
    %v168 = vmul.f32 %v145, %v165
    %169 = vst [vmem:[#allocation8] sm:$0xff] %v167
    %170 = vst [vmem:[#allocation8 + $0x8] sm:$0xff] %v168
    %vm171 = vcmask 0
    %172 = vst.msk [vmem:[#allocation9] sm:$0x1] %vm171, %v79
    %173 = vst.msk [vmem:[#allocation11] sm:$0x1] %vm171, %v83
    %174 = vst.msk [vmem:[#allocation12] sm:$0x1] %vm171, %v106
    %175 = vst.msk [vmem:[#allocation14] sm:$0x1] %vm171, %v87
    %176 = vst.msk [vmem:[#allocation15] sm:$0x1] %vm171, %v107
    %177 = vst.msk [vmem:[#allocation17] sm:$0x1] %vm171, %v127
    %178 = vst.msk [vmem:[#allocation18] sm:$0x1] %vm171, 0.0
    // Predicated region
    $region22: #{tpu_custom_call.1} parent=1 // pred_check
      _
    $region23: #{tpu_custom_call.1} parent=1 // pred_check_branch
      %180 = sbr.rel (0) target = $region25
    $region24: #{tpu_custom_call.1} parent=1 // pred_region
      %182 = vsyncadd [#allocation7], 0
      %s183 = sshll.u32 [#allocation8], 4
      %s184 = int_to_ptr.vmem [resolvable:$true] %s183
      %s185 = sshll.u32 %s4, 4
      %s186 = int_to_ptr.hbm [resolvable:$true] %s185
      %191 = dma.vmem_to_hbm [thread:$0]  %s184, 256, %s186, [#allocation7], 128, 128, 8
    $region25: #{tpu_custom_call.1} parent=1 // pred_fallthru
      _
    // Predicated region
    $region26: #{tpu_custom_call.1} parent=1 // pred_check
      _
    $region27: #{tpu_custom_call.1} parent=1 // pred_check_branch
      %193 = sbr.rel (0) target = $region29
    $region28: #{tpu_custom_call.1} parent=1 // pred_region
      %195 = vsyncadd [#allocation10], 0
      %s197 = sshll.u32 [#allocation9], 4
      %s198 = int_to_ptr.vmem [resolvable:$true] %s197
      %s199 = sshll.u32 %s5, 4
      %s200 = int_to_ptr.hbm [resolvable:$true] %s199
      %202 = dma.vmem_to_hbm [thread:$0]  %s198, 16, %s200, [#allocation10]
    $region29: #{tpu_custom_call.1} parent=1 // pred_fallthru
      _
    // Predicated region
    $region30: #{tpu_custom_call.1} parent=1 // pred_check
      _
    $region31: #{tpu_custom_call.1} parent=1 // pred_check_branch
      %204 = sbr.rel (0) target = $region33
    $region32: #{tpu_custom_call.1} parent=1 // pred_region
      %206 = vsyncadd [#allocation10], 0
      %s208 = sshll.u32 [#allocation11], 4
      %s209 = int_to_ptr.vmem [resolvable:$true] %s208
      %s210 = sshll.u32 %s6, 4
      %s211 = int_to_ptr.hbm [resolvable:$true] %s210
      %213 = dma.vmem_to_hbm [thread:$0]  %s209, 16, %s211, [#allocation10]
    $region33: #{tpu_custom_call.1} parent=1 // pred_fallthru
      _
    // Predicated region
    $region34: #{tpu_custom_call.1} parent=1 // pred_check
      _
    $region35: #{tpu_custom_call.1} parent=1 // pred_check_branch
      %215 = sbr.rel (0) target = $region37
    $region36: #{tpu_custom_call.1} parent=1 // pred_region
      %217 = vsyncadd [#allocation13], 0
      %s219 = sshll.u32 [#allocation12], 4
      %s220 = int_to_ptr.vmem [resolvable:$true] %s219
      %s221 = sshll.u32 %s7, 4
      %s222 = int_to_ptr.hbm [resolvable:$true] %s221
      %224 = dma.vmem_to_hbm [thread:$0]  %s220, 16, %s222, [#allocation13]
    $region37: #{tpu_custom_call.1} parent=1 // pred_fallthru
      _
    // Predicated region
    $region38: #{tpu_custom_call.1} parent=1 // pred_check
      _
    $region39: #{tpu_custom_call.1} parent=1 // pred_check_branch
      %226 = sbr.rel (0) target = $region41
    $region40: #{tpu_custom_call.1} parent=1 // pred_region
      %228 = vsyncadd [#allocation13], 0
      %s230 = sshll.u32 [#allocation14], 4
      %s231 = int_to_ptr.vmem [resolvable:$true] %s230
      %s232 = sshll.u32 %s8, 4
      %s233 = int_to_ptr.hbm [resolvable:$true] %s232
      %235 = dma.vmem_to_hbm [thread:$0]  %s231, 16, %s233, [#allocation13]
    $region41: #{tpu_custom_call.1} parent=1 // pred_fallthru
      _
    // Predicated region
    $region42: #{tpu_custom_call.1} parent=1 // pred_check
      _
    $region43: #{tpu_custom_call.1} parent=1 // pred_check_branch
      %237 = sbr.rel (0) target = $region45
    $region44: #{tpu_custom_call.1} parent=1 // pred_region
      %239 = vsyncadd [#allocation16], 0
      %s241 = sshll.u32 [#allocation15], 4
      %s242 = int_to_ptr.vmem [resolvable:$true] %s241
      %s243 = sshll.u32 %s9, 4
      %s244 = int_to_ptr.hbm [resolvable:$true] %s243
      %246 = dma.vmem_to_hbm [thread:$0]  %s242, 16, %s244, [#allocation16]
    $region45: #{tpu_custom_call.1} parent=1 // pred_fallthru
      _
    // Predicated region
    $region46: #{tpu_custom_call.1} parent=1 // pred_check
      _
    $region47: #{tpu_custom_call.1} parent=1 // pred_check_branch
      %248 = sbr.rel (0) target = $region49
    $region48: #{tpu_custom_call.1} parent=1 // pred_region
      %250 = vsyncadd [#allocation16], 0
      %s252 = sshll.u32 [#allocation17], 4
      %s253 = int_to_ptr.vmem [resolvable:$true] %s252
      %s254 = sshll.u32 %s10, 4
      %s255 = int_to_ptr.hbm [resolvable:$true] %s254
      %257 = dma.vmem_to_hbm [thread:$0]  %s253, 16, %s255, [#allocation16]
    $region49: #{tpu_custom_call.1} parent=1 // pred_fallthru
      _
    // Predicated region
    $region50: #{tpu_custom_call.1} parent=1 // pred_check
      _
    $region51: #{tpu_custom_call.1} parent=1 // pred_check_branch
      %259 = sbr.rel (0) target = $region53
    $region52: #{tpu_custom_call.1} parent=1 // pred_region
      %261 = vsyncadd [#allocation19], 0
      %s263 = sshll.u32 [#allocation18], 4
      %s264 = int_to_ptr.vmem [resolvable:$true] %s263
      %s265 = sshll.u32 %s11, 4
      %s266 = int_to_ptr.hbm [resolvable:$true] %s265
      %268 = dma.vmem_to_hbm [thread:$0]  %s264, 16, %s266, [#allocation19]
    $region53: #{tpu_custom_call.1} parent=1 // pred_fallthru
      _
    // Predicated region
    $region54: #{tpu_custom_call.1} parent=1 // pred_check
      _
    $region55: #{tpu_custom_call.1} parent=1 // pred_check_branch
      %270 = sbr.rel (0) target = $region57
    $region56: #{tpu_custom_call.1} parent=1 // pred_region
      %272 = dma.done [#allocation7], 256
    $region57: #{tpu_custom_call.1} parent=1 // pred_fallthru
      _
    // Predicated region
    $region58: #{tpu_custom_call.1} parent=1 // pred_check
      _
    $region59: #{tpu_custom_call.1} parent=1 // pred_check_branch
      %274 = sbr.rel (0) target = $region61
    $region60: #{tpu_custom_call.1} parent=1 // pred_region
      %276 = dma.done [#allocation10], 16
    $region61: #{tpu_custom_call.1} parent=1 // pred_fallthru
      _
    // Predicated region
    $region62: #{tpu_custom_call.1} parent=1 // pred_check
      _
    $region63: #{tpu_custom_call.1} parent=1 // pred_check_branch
      %278 = sbr.rel (0) target = $region65
    $region64: #{tpu_custom_call.1} parent=1 // pred_region
      %280 = dma.done [#allocation10], 16
    $region65: #{tpu_custom_call.1} parent=1 // pred_fallthru
      _
    // Predicated region
    $region66: #{tpu_custom_call.1} parent=1 // pred_check
      _
    $region67: #{tpu_custom_call.1} parent=1 // pred_check_branch
      %282 = sbr.rel (0) target = $region69
    $region68: #{tpu_custom_call.1} parent=1 // pred_region
      %284 = dma.done [#allocation13], 16
    $region69: #{tpu_custom_call.1} parent=1 // pred_fallthru
      _
    // Predicated region
    $region70: #{tpu_custom_call.1} parent=1 // pred_check
      _
    $region71: #{tpu_custom_call.1} parent=1 // pred_check_branch
      %286 = sbr.rel (0) target = $region73
    $region72: #{tpu_custom_call.1} parent=1 // pred_region
      %288 = dma.done [#allocation13], 16
    $region73: #{tpu_custom_call.1} parent=1 // pred_fallthru
      _
    // Predicated region
    $region74: #{tpu_custom_call.1} parent=1 // pred_check
      _
    $region75: #{tpu_custom_call.1} parent=1 // pred_check_branch
      %290 = sbr.rel (0) target = $region77
    $region76: #{tpu_custom_call.1} parent=1 // pred_region
      %292 = dma.done [#allocation16], 16
    $region77: #{tpu_custom_call.1} parent=1 // pred_fallthru
      _
    // Predicated region
    $region78: #{tpu_custom_call.1} parent=1 // pred_check
      _
    $region79: #{tpu_custom_call.1} parent=1 // pred_check_branch
      %294 = sbr.rel (0) target = $region81
    $region80: #{tpu_custom_call.1} parent=1 // pred_region
      %296 = dma.done [#allocation16], 16
    $region81: #{tpu_custom_call.1} parent=1 // pred_fallthru
      _
    // Predicated region
    $region82: #{tpu_custom_call.1} parent=1 // pred_check
      _
    $region83: #{tpu_custom_call.1} parent=1 // pred_check_branch
      %298 = sbr.rel (0) target = $region85
    $region84: #{tpu_custom_call.1} parent=1 // pred_region
      %300 = dma.done [#allocation19], 16
    $region85: #{tpu_custom_call.1} parent=1 // pred_fallthru
      _
    %301 = vsyncpa [#allocation6], 1
    %302 = vsyncpa [#allocation7], 1
    %303 = vsyncpa [#allocation10], 1
    %304 = vsyncpa [#allocation13], 1
    %305 = vsyncpa [#allocation16], 1
    %306 = vsyncpa [#allocation19], 1

</llo_original>
